<compile_context>
chip_gen: v7x
topology: tpu7x:2x2x1
jax: 0.10.0
libtpu: 0.0.40
codegen_flags: <defaults>
</compile_context>

<pallas_src>
import jax
import jax.numpy as jnp
from jax import lax
from jax.experimental import pallas as pl
from jax.experimental.pallas import tpu as pltpu


def _lstm_decoder_kernel(x2d_ref, h0_ref, c0_ref,
                         w_ih_t_ref, w_hh_t_ref, bias_ref,
                         w_dec_t_ref, b_dec_ref,
                         out_ref):
    B = h0_ref.shape[1]
    H = h0_ref.shape[2]
    S = x2d_ref.shape[0] // B

    # One-shot input projection for every time step (no recurrent dependence,
    # so it stays off the serial critical path). Single bf16 MXU pass, f32
    # accumulation; the result stays in vregs (no VMEM scratch).
    gx_all = (jnp.dot(x2d_ref[...].astype(jnp.bfloat16),
                      w_ih_t_ref[...].astype(jnp.bfloat16),
                      preferred_element_type=jnp.float32)
              + bias_ref[...])                     # (B*S, 4H), f32
    gx3d = gx_all.reshape(B, S, 4 * H)             # [b, t, :] = gates_x(x[b, t])

    # Hoist + pre-cast the recurrent weight once: one MXU pass per step.
    w_hh_bf = w_hh_t_ref[...].astype(jnp.bfloat16)  # (H, 4H)

    def step(t, carry):
        h, c = carry                                # (B, H) f32 each
        gates = gx3d[:, t, :] + jnp.dot(h.astype(jnp.bfloat16), w_hh_bf,
                                        preferred_element_type=jnp.float32)
        # Gate order permuted in the wrapper to [i, f, o, g]:
        # one sigmoid over 3H lanes, one tanh over H lanes.
        sig = jax.nn.sigmoid(gates[:, 0:3 * H])
        g_g = jnp.tanh(gates[:, 3 * H:4 * H])
        i_g = sig[:, 0:H]
        f_g = sig[:, H:2 * H]
        o_g = sig[:, 2 * H:3 * H]
        c_new = f_g * c + i_g * g_g
        h_new = o_g * jnp.tanh(c_new)
        return h_new, c_new

    if S <= 8:
        # Fully unrolled with static (Python-int) time indices -> static
        # slices of the register-resident gx3d, best LLO visibility.
        h, c = h0_ref[0], c0_ref[0]
        for t in range(S):
            h, c = step(t, (h, c))
        h_final = h
    else:
        # Capped unroll keeps vreg pressure / code size bounded if S grows.
        h_final, _ = lax.fori_loop(0, S, step, (h0_ref[0], c0_ref[0]),
                                   unroll=8)

    # Folded decoder: decoder(h) = h @ (W2 @ W1)^T + (b1 @ W2^T + b2)
    out = (jnp.dot(h_final.astype(jnp.bfloat16),
                   w_dec_t_ref[...].astype(jnp.bfloat16),
                   preferred_element_type=jnp.float32)
           + b_dec_ref[...])
    out_ref[0] = out.astype(out_ref.dtype)


def lstm_model_forward(x, h0, c0, params):
    """x: (B, S, I) batch_first, h0/c0: (1, B, H). Returns (1, B, O)."""
    w_ih, w_hh, b_ih, b_hh, w1, b1, w2, b2 = params
    B, S, I = x.shape
    H = w_hh.shape[1]
    O = w2.shape[0]

    # Gate-row permutation (done once, free): PyTorch [i, f, g, o] -> [i, f, o, g]
    # so the kernel applies a single sigmoid over the first 3H lanes.
    perm = jnp.concatenate([jnp.arange(0, 2 * H),
                            jnp.arange(3 * H, 4 * H),
                            jnp.arange(2 * H, 3 * H)])
    w_ih_t = w_ih[perm].T                                   # (I, 4H)
    w_hh_t = w_hh[perm].T                                   # (H, 4H)
    bias = (b_ih + b_hh)[perm].reshape(1, 4 * H)            # (1, 4H)

    # Two bias-only decoder Linears folded into one linear map (valid: the
    # nn.Sequential has no nonlinearity between them).
    w_dec_t = w1.T @ w2.T                                   # (H, O) == (W2@W1)^T
    b_dec = (b1 @ w2.T + b2).reshape(1, O)                  # (1, O)

    # Pure reshape (no transpose / extra HBM pass): row b*S + t of x2d = x[b, t].
    x2d = x.reshape(B * S, I)

    return pl.pallas_call(
        _lstm_decoder_kernel,
        out_shape=jax.ShapeDtypeStruct((1, B, O), jnp.float32),
        in_specs=[pl.BlockSpec(memory_space=pltpu.MemorySpace.VMEM)] * 8,
        out_specs=pl.BlockSpec(memory_space=pltpu.MemorySpace.VMEM),
    )(x2d, h0, c0, w_ih_t, w_hh_t, bias, w_dec_t, b_dec)


def reference_forward(x, h0, c0, params):
    """Pure-JAX reference mirroring torch.nn.LSTM + decoder semantics."""
    w_ih, w_hh, b_ih, b_hh, w1, b1, w2, b2 = params
    H = w_hh.shape[1]
    h = h0[0]
    c = c0[0]
    S = x.shape[1]
    for t in range(S):
        x_t = x[:, t, :]
        gates = x_t @ w_ih.T + h @ w_hh.T + b_ih + b_hh
        i_g = jax.nn.sigmoid(gates[:, 0:H])
        f_g = jax.nn.sigmoid(gates[:, H:2 * H])
        g_g = jnp.tanh(gates[:, 2 * H:3 * H])
        o_g = jax.nn.sigmoid(gates[:, 3 * H:4 * H])
        c = f_g * c + i_g * g_g
        h = o_g * jnp.tanh(c)
    d1 = h @ w1.T + b1
    d2 = d1 @ w2.T + b2
    return d2[None, :, :]


if __name__ == "__main__":
    # Small config consistent with the module:
    # input_neuron=4, hidden_neuron=32, output_neuron=4, batch=2, seq=8
    B, S, I, H, O = 2, 8, 4, 32, 4
    H2 = H // 2

    key = jax.random.PRNGKey(0)
    ks = jax.random.split(key, 12)
    scale = 0.1
    w_ih = scale * jax.random.normal(ks[0], (4 * H, I), jnp.float32)
    w_hh = scale * jax.random.normal(ks[1], (4 * H, H), jnp.float32)
    b_ih = scale * jax.random.normal(ks[2], (4 * H,), jnp.float32)
    b_hh = scale * jax.random.normal(ks[3], (4 * H,), jnp.float32)
    w1 = scale * jax.random.normal(ks[4], (H2, H), jnp.float32)
    b1 = scale * jax.random.normal(ks[5], (H2,), jnp.float32)
    w2 = scale * jax.random.normal(ks[6], (O, H2), jnp.float32)
    b2 = scale * jax.random.normal(ks[7], (O,), jnp.float32)
    params = (w_ih, w_hh, b_ih, b_hh, w1, b1, w2, b2)

    x = jax.random.normal(ks[8], (B, S, I), jnp.float32)
    h0 = jax.random.normal(ks[9], (1, B, H), jnp.float32)
    c0 = jax.random.normal(ks[10], (1, B, H), jnp.float32)

    out = lstm_model_forward(x, h0, c0, params)
    out = jax.block_until_ready(out)

    ref = reference_forward(x, h0, c0, params)
    assert out.shape == (1, B, O), out.shape
    # Tolerance accounts for the kernel's explicit bf16-operand / f32-accum MXU
    # passes vs. the reference's default-precision f32 matmuls.
    assert jnp.allclose(out, ref, rtol=3e-3, atol=3e-3), (
        f"max err {jnp.max(jnp.abs(out - ref))}")

    print("KERNEL_OK")
</pallas_src>

<mosaic_0001>
module attributes {stable_mosaic.version = 11 : i64} {
  func.func @_lstm_decoder_kernel(%arg0: memref<16x4xf32, #tpu.memory_space<vmem>>, %arg1: memref<1x2x32xf32, #tpu.memory_space<vmem>>, %arg2: memref<1x2x32xf32, #tpu.memory_space<vmem>>, %arg3: memref<4x128xf32, #tpu.memory_space<vmem>>, %arg4: memref<32x128xf32, #tpu.memory_space<vmem>>, %arg5: memref<1x128xf32, #tpu.memory_space<vmem>>, %arg6: memref<32x4xf32, #tpu.memory_space<vmem>>, %arg7: memref<1x4xf32, #tpu.memory_space<vmem>>, %arg8: memref<1x2x4xf32, #tpu.memory_space<vmem>>) attributes {dimension_semantics = [], scalar_prefetch = 0 : i64, scratch_operands = 0 : i64, tpu.core_type = #tpu.core_type<tc>} {
    %c0 = arith.constant 0 : index
    %c0_0 = arith.constant 0 : index
    %0 = vector.load %arg0[%c0, %c0_0] : memref<16x4xf32, #tpu.memory_space<vmem>>, vector<16x4xf32>
    %1 = arith.truncf %0 : vector<16x4xf32> to vector<16x4xbf16>
    %c0_1 = arith.constant 0 : index
    %c0_2 = arith.constant 0 : index
    %2 = vector.load %arg3[%c0_1, %c0_2] : memref<4x128xf32, #tpu.memory_space<vmem>>, vector<4x128xf32>
    %3 = arith.truncf %2 : vector<4x128xf32> to vector<4x128xbf16>
    %cst = arith.constant dense<0.000000e+00> : vector<16x128xf32>
    %4 = tpu.matmul %1, %3, %cst {dimension_numbers = #tpu.dot_dimension_numbers<[1], [0], [0], [1], [0, 0, 1, 1], [], []>} : vector<16x4xbf16>, vector<4x128xbf16>, vector<16x128xf32> -> vector<16x128xf32>
    %c0_3 = arith.constant 0 : index
    %c0_4 = arith.constant 0 : index
    %5 = vector.load %arg5[%c0_3, %c0_4] : memref<1x128xf32, #tpu.memory_space<vmem>>, vector<1x128xf32>
    %6 = vector.broadcast %5 : vector<1x128xf32> to vector<16x128xf32>
    %7 = arith.addf %4, %6 : vector<16x128xf32>
    %8 = vector.shape_cast %7 : vector<16x128xf32> to vector<2x8x128xf32>
    %c0_5 = arith.constant 0 : index
    %c0_6 = arith.constant 0 : index
    %9 = vector.load %arg4[%c0_5, %c0_6] : memref<32x128xf32, #tpu.memory_space<vmem>>, vector<32x128xf32>
    %10 = arith.truncf %9 : vector<32x128xf32> to vector<32x128xbf16>
    %c0_7 = arith.constant 0 : index
    %c0_8 = arith.constant 0 : index
    %c0_9 = arith.constant 0 : index
    %11 = vector.load %arg1[%c0_7, %c0_8, %c0_9] : memref<1x2x32xf32, #tpu.memory_space<vmem>>, vector<1x2x32xf32>
    %12 = vector.shape_cast %11 : vector<1x2x32xf32> to vector<2x32xf32>
    %c0_10 = arith.constant 0 : index
    %c0_11 = arith.constant 0 : index
    %c0_12 = arith.constant 0 : index
    %13 = vector.load %arg2[%c0_10, %c0_11, %c0_12] : memref<1x2x32xf32, #tpu.memory_space<vmem>>, vector<1x2x32xf32>
    %14 = vector.shape_cast %13 : vector<1x2x32xf32> to vector<2x32xf32>
    %15 = vector.extract_strided_slice %8 {offsets = [0, 0, 0], sizes = [2, 1, 128], strides = [1, 1, 1]} : vector<2x8x128xf32> to vector<2x1x128xf32>
    %16 = vector.shape_cast %15 : vector<2x1x128xf32> to vector<2x128xf32>
    %17 = arith.truncf %12 : vector<2x32xf32> to vector<2x32xbf16>
    %cst_13 = arith.constant dense<0.000000e+00> : vector<2x128xf32>
    %18 = tpu.matmul %17, %10, %cst_13 {dimension_numbers = #tpu.dot_dimension_numbers<[1], [0], [0], [1], [0, 0, 1, 1], [], []>} : vector<2x32xbf16>, vector<32x128xbf16>, vector<2x128xf32> -> vector<2x128xf32>
    %19 = arith.addf %16, %18 : vector<2x128xf32>
    %20 = vector.extract_strided_slice %19 {offsets = [0, 0], sizes = [2, 96], strides = [1, 1]} : vector<2x128xf32> to vector<2x96xf32>
    %21 = arith.negf %20 : vector<2x96xf32>
    %22 = math.exp %21 : vector<2x96xf32>
    %cst_14 = arith.constant 1.000000e+00 : f32
    %23 = vector.broadcast %cst_14 : f32 to vector<2x96xf32>
    %24 = arith.addf %23, %22 : vector<2x96xf32>
    %25 = arith.divf %23, %24 : vector<2x96xf32>
    %26 = vector.extract_strided_slice %19 {offsets = [0, 96], sizes = [2, 32], strides = [1, 1]} : vector<2x128xf32> to vector<2x32xf32>
    %27 = math.tanh %26 : vector<2x32xf32>
    %28 = vector.extract_strided_slice %25 {offsets = [0, 0], sizes = [2, 32], strides = [1, 1]} : vector<2x96xf32> to vector<2x32xf32>
    %29 = vector.extract_strided_slice %25 {offsets = [0, 32], sizes = [2, 32], strides = [1, 1]} : vector<2x96xf32> to vector<2x32xf32>
    %30 = vector.extract_strided_slice %25 {offsets = [0, 64], sizes = [2, 32], strides = [1, 1]} : vector<2x96xf32> to vector<2x32xf32>
    %31 = arith.mulf %29, %14 : vector<2x32xf32>
    %32 = arith.mulf %28, %27 : vector<2x32xf32>
    %33 = arith.addf %31, %32 : vector<2x32xf32>
    %34 = math.tanh %33 : vector<2x32xf32>
    %35 = arith.mulf %30, %34 : vector<2x32xf32>
    %36 = vector.extract_strided_slice %8 {offsets = [0, 1, 0], sizes = [2, 1, 128], strides = [1, 1, 1]} : vector<2x8x128xf32> to vector<2x1x128xf32>
    %37 = vector.shape_cast %36 : vector<2x1x128xf32> to vector<2x128xf32>
    %38 = arith.truncf %35 : vector<2x32xf32> to vector<2x32xbf16>
    %cst_15 = arith.constant dense<0.000000e+00> : vector<2x128xf32>
    %39 = tpu.matmul %38, %10, %cst_15 {dimension_numbers = #tpu.dot_dimension_numbers<[1], [0], [0], [1], [0, 0, 1, 1], [], []>} : vector<2x32xbf16>, vector<32x128xbf16>, vector<2x128xf32> -> vector<2x128xf32>
    %40 = arith.addf %37, %39 : vector<2x128xf32>
    %41 = vector.extract_strided_slice %40 {offsets = [0, 0], sizes = [2, 96], strides = [1, 1]} : vector<2x128xf32> to vector<2x96xf32>
    %42 = arith.negf %41 : vector<2x96xf32>
    %43 = math.exp %42 : vector<2x96xf32>
    %cst_16 = arith.constant 1.000000e+00 : f32
    %44 = vector.broadcast %cst_16 : f32 to vector<2x96xf32>
    %45 = arith.addf %44, %43 : vector<2x96xf32>
    %46 = arith.divf %44, %45 : vector<2x96xf32>
    %47 = vector.extract_strided_slice %40 {offsets = [0, 96], sizes = [2, 32], strides = [1, 1]} : vector<2x128xf32> to vector<2x32xf32>
    %48 = math.tanh %47 : vector<2x32xf32>
    %49 = vector.extract_strided_slice %46 {offsets = [0, 0], sizes = [2, 32], strides = [1, 1]} : vector<2x96xf32> to vector<2x32xf32>
    %50 = vector.extract_strided_slice %46 {offsets = [0, 32], sizes = [2, 32], strides = [1, 1]} : vector<2x96xf32> to vector<2x32xf32>
    %51 = vector.extract_strided_slice %46 {offsets = [0, 64], sizes = [2, 32], strides = [1, 1]} : vector<2x96xf32> to vector<2x32xf32>
    %52 = arith.mulf %50, %33 : vector<2x32xf32>
    %53 = arith.mulf %49, %48 : vector<2x32xf32>
    %54 = arith.addf %52, %53 : vector<2x32xf32>
    %55 = math.tanh %54 : vector<2x32xf32>
    %56 = arith.mulf %51, %55 : vector<2x32xf32>
    %57 = vector.extract_strided_slice %8 {offsets = [0, 2, 0], sizes = [2, 1, 128], strides = [1, 1, 1]} : vector<2x8x128xf32> to vector<2x1x128xf32>
    %58 = vector.shape_cast %57 : vector<2x1x128xf32> to vector<2x128xf32>
    %59 = arith.truncf %56 : vector<2x32xf32> to vector<2x32xbf16>
    %cst_17 = arith.constant dense<0.000000e+00> : vector<2x128xf32>
    %60 = tpu.matmul %59, %10, %cst_17 {dimension_numbers = #tpu.dot_dimension_numbers<[1], [0], [0], [1], [0, 0, 1, 1], [], []>} : vector<2x32xbf16>, vector<32x128xbf16>, vector<2x128xf32> -> vector<2x128xf32>
    %61 = arith.addf %58, %60 : vector<2x128xf32>
    %62 = vector.extract_strided_slice %61 {offsets = [0, 0], sizes = [2, 96], strides = [1, 1]} : vector<2x128xf32> to vector<2x96xf32>
    %63 = arith.negf %62 : vector<2x96xf32>
    %64 = math.exp %63 : vector<2x96xf32>
    %cst_18 = arith.constant 1.000000e+00 : f32
    %65 = vector.broadcast %cst_18 : f32 to vector<2x96xf32>
    %66 = arith.addf %65, %64 : vector<2x96xf32>
    %67 = arith.divf %65, %66 : vector<2x96xf32>
    %68 = vector.extract_strided_slice %61 {offsets = [0, 96], sizes = [2, 32], strides = [1, 1]} : vector<2x128xf32> to vector<2x32xf32>
    %69 = math.tanh %68 : vector<2x32xf32>
    %70 = vector.extract_strided_slice %67 {offsets = [0, 0], sizes = [2, 32], strides = [1, 1]} : vector<2x96xf32> to vector<2x32xf32>
    %71 = vector.extract_strided_slice %67 {offsets = [0, 32], sizes = [2, 32], strides = [1, 1]} : vector<2x96xf32> to vector<2x32xf32>
    %72 = vector.extract_strided_slice %67 {offsets = [0, 64], sizes = [2, 32], strides = [1, 1]} : vector<2x96xf32> to vector<2x32xf32>
    %73 = arith.mulf %71, %54 : vector<2x32xf32>
    %74 = arith.mulf %70, %69 : vector<2x32xf32>
    %75 = arith.addf %73, %74 : vector<2x32xf32>
    %76 = math.tanh %75 : vector<2x32xf32>
    %77 = arith.mulf %72, %76 : vector<2x32xf32>
    %78 = vector.extract_strided_slice %8 {offsets = [0, 3, 0], sizes = [2, 1, 128], strides = [1, 1, 1]} : vector<2x8x128xf32> to vector<2x1x128xf32>
    %79 = vector.shape_cast %78 : vector<2x1x128xf32> to vector<2x128xf32>
    %80 = arith.truncf %77 : vector<2x32xf32> to vector<2x32xbf16>
    %cst_19 = arith.constant dense<0.000000e+00> : vector<2x128xf32>
    %81 = tpu.matmul %80, %10, %cst_19 {dimension_numbers = #tpu.dot_dimension_numbers<[1], [0], [0], [1], [0, 0, 1, 1], [], []>} : vector<2x32xbf16>, vector<32x128xbf16>, vector<2x128xf32> -> vector<2x128xf32>
    %82 = arith.addf %79, %81 : vector<2x128xf32>
    %83 = vector.extract_strided_slice %82 {offsets = [0, 0], sizes = [2, 96], strides = [1, 1]} : vector<2x128xf32> to vector<2x96xf32>
    %84 = arith.negf %83 : vector<2x96xf32>
    %85 = math.exp %84 : vector<2x96xf32>
    %cst_20 = arith.constant 1.000000e+00 : f32
    %86 = vector.broadcast %cst_20 : f32 to vector<2x96xf32>
    %87 = arith.addf %86, %85 : vector<2x96xf32>
    %88 = arith.divf %86, %87 : vector<2x96xf32>
    %89 = vector.extract_strided_slice %82 {offsets = [0, 96], sizes = [2, 32], strides = [1, 1]} : vector<2x128xf32> to vector<2x32xf32>
    %90 = math.tanh %89 : vector<2x32xf32>
    %91 = vector.extract_strided_slice %88 {offsets = [0, 0], sizes = [2, 32], strides = [1, 1]} : vector<2x96xf32> to vector<2x32xf32>
    %92 = vector.extract_strided_slice %88 {offsets = [0, 32], sizes = [2, 32], strides = [1, 1]} : vector<2x96xf32> to vector<2x32xf32>
    %93 = vector.extract_strided_slice %88 {offsets = [0, 64], sizes = [2, 32], strides = [1, 1]} : vector<2x96xf32> to vector<2x32xf32>
    %94 = arith.mulf %92, %75 : vector<2x32xf32>
    %95 = arith.mulf %91, %90 : vector<2x32xf32>
    %96 = arith.addf %94, %95 : vector<2x32xf32>
    %97 = math.tanh %96 : vector<2x32xf32>
    %98 = arith.mulf %93, %97 : vector<2x32xf32>
    %99 = vector.extract_strided_slice %8 {offsets = [0, 4, 0], sizes = [2, 1, 128], strides = [1, 1, 1]} : vector<2x8x128xf32> to vector<2x1x128xf32>
    %100 = vector.shape_cast %99 : vector<2x1x128xf32> to vector<2x128xf32>
    %101 = arith.truncf %98 : vector<2x32xf32> to vector<2x32xbf16>
    %cst_21 = arith.constant dense<0.000000e+00> : vector<2x128xf32>
    %102 = tpu.matmul %101, %10, %cst_21 {dimension_numbers = #tpu.dot_dimension_numbers<[1], [0], [0], [1], [0, 0, 1, 1], [], []>} : vector<2x32xbf16>, vector<32x128xbf16>, vector<2x128xf32> -> vector<2x128xf32>
    %103 = arith.addf %100, %102 : vector<2x128xf32>
    %104 = vector.extract_strided_slice %103 {offsets = [0, 0], sizes = [2, 96], strides = [1, 1]} : vector<2x128xf32> to vector<2x96xf32>
    %105 = arith.negf %104 : vector<2x96xf32>
    %106 = math.exp %105 : vector<2x96xf32>
    %cst_22 = arith.constant 1.000000e+00 : f32
    %107 = vector.broadcast %cst_22 : f32 to vector<2x96xf32>
    %108 = arith.addf %107, %106 : vector<2x96xf32>
    %109 = arith.divf %107, %108 : vector<2x96xf32>
    %110 = vector.extract_strided_slice %103 {offsets = [0, 96], sizes = [2, 32], strides = [1, 1]} : vector<2x128xf32> to vector<2x32xf32>
    %111 = math.tanh %110 : vector<2x32xf32>
    %112 = vector.extract_strided_slice %109 {offsets = [0, 0], sizes = [2, 32], strides = [1, 1]} : vector<2x96xf32> to vector<2x32xf32>
    %113 = vector.extract_strided_slice %109 {offsets = [0, 32], sizes = [2, 32], strides = [1, 1]} : vector<2x96xf32> to vector<2x32xf32>
    %114 = vector.extract_strided_slice %109 {offsets = [0, 64], sizes = [2, 32], strides = [1, 1]} : vector<2x96xf32> to vector<2x32xf32>
    %115 = arith.mulf %113, %96 : vector<2x32xf32>
    %116 = arith.mulf %112, %111 : vector<2x32xf32>
    %117 = arith.addf %115, %116 : vector<2x32xf32>
    %118 = math.tanh %117 : vector<2x32xf32>
    %119 = arith.mulf %114, %118 : vector<2x32xf32>
    %120 = vector.extract_strided_slice %8 {offsets = [0, 5, 0], sizes = [2, 1, 128], strides = [1, 1, 1]} : vector<2x8x128xf32> to vector<2x1x128xf32>
    %121 = vector.shape_cast %120 : vector<2x1x128xf32> to vector<2x128xf32>
    %122 = arith.truncf %119 : vector<2x32xf32> to vector<2x32xbf16>
    %cst_23 = arith.constant dense<0.000000e+00> : vector<2x128xf32>
    %123 = tpu.matmul %122, %10, %cst_23 {dimension_numbers = #tpu.dot_dimension_numbers<[1], [0], [0], [1], [0, 0, 1, 1], [], []>} : vector<2x32xbf16>, vector<32x128xbf16>, vector<2x128xf32> -> vector<2x128xf32>
    %124 = arith.addf %121, %123 : vector<2x128xf32>
    %125 = vector.extract_strided_slice %124 {offsets = [0, 0], sizes = [2, 96], strides = [1, 1]} : vector<2x128xf32> to vector<2x96xf32>
    %126 = arith.negf %125 : vector<2x96xf32>
    %127 = math.exp %126 : vector<2x96xf32>
    %cst_24 = arith.constant 1.000000e+00 : f32
    %128 = vector.broadcast %cst_24 : f32 to vector<2x96xf32>
    %129 = arith.addf %128, %127 : vector<2x96xf32>
    %130 = arith.divf %128, %129 : vector<2x96xf32>
    %131 = vector.extract_strided_slice %124 {offsets = [0, 96], sizes = [2, 32], strides = [1, 1]} : vector<2x128xf32> to vector<2x32xf32>
    %132 = math.tanh %131 : vector<2x32xf32>
    %133 = vector.extract_strided_slice %130 {offsets = [0, 0], sizes = [2, 32], strides = [1, 1]} : vector<2x96xf32> to vector<2x32xf32>
    %134 = vector.extract_strided_slice %130 {offsets = [0, 32], sizes = [2, 32], strides = [1, 1]} : vector<2x96xf32> to vector<2x32xf32>
    %135 = vector.extract_strided_slice %130 {offsets = [0, 64], sizes = [2, 32], strides = [1, 1]} : vector<2x96xf32> to vector<2x32xf32>
    %136 = arith.mulf %134, %117 : vector<2x32xf32>
    %137 = arith.mulf %133, %132 : vector<2x32xf32>
    %138 = arith.addf %136, %137 : vector<2x32xf32>
    %139 = math.tanh %138 : vector<2x32xf32>
    %140 = arith.mulf %135, %139 : vector<2x32xf32>
    %141 = vector.extract_strided_slice %8 {offsets = [0, 6, 0], sizes = [2, 1, 128], strides = [1, 1, 1]} : vector<2x8x128xf32> to vector<2x1x128xf32>
    %142 = vector.shape_cast %141 : vector<2x1x128xf32> to vector<2x128xf32>
    %143 = arith.truncf %140 : vector<2x32xf32> to vector<2x32xbf16>
    %cst_25 = arith.constant dense<0.000000e+00> : vector<2x128xf32>
    %144 = tpu.matmul %143, %10, %cst_25 {dimension_numbers = #tpu.dot_dimension_numbers<[1], [0], [0], [1], [0, 0, 1, 1], [], []>} : vector<2x32xbf16>, vector<32x128xbf16>, vector<2x128xf32> -> vector<2x128xf32>
    %145 = arith.addf %142, %144 : vector<2x128xf32>
    %146 = vector.extract_strided_slice %145 {offsets = [0, 0], sizes = [2, 96], strides = [1, 1]} : vector<2x128xf32> to vector<2x96xf32>
    %147 = arith.negf %146 : vector<2x96xf32>
    %148 = math.exp %147 : vector<2x96xf32>
    %cst_26 = arith.constant 1.000000e+00 : f32
    %149 = vector.broadcast %cst_26 : f32 to vector<2x96xf32>
    %150 = arith.addf %149, %148 : vector<2x96xf32>
    %151 = arith.divf %149, %150 : vector<2x96xf32>
    %152 = vector.extract_strided_slice %145 {offsets = [0, 96], sizes = [2, 32], strides = [1, 1]} : vector<2x128xf32> to vector<2x32xf32>
    %153 = math.tanh %152 : vector<2x32xf32>
    %154 = vector.extract_strided_slice %151 {offsets = [0, 0], sizes = [2, 32], strides = [1, 1]} : vector<2x96xf32> to vector<2x32xf32>
    %155 = vector.extract_strided_slice %151 {offsets = [0, 32], sizes = [2, 32], strides = [1, 1]} : vector<2x96xf32> to vector<2x32xf32>
    %156 = vector.extract_strided_slice %151 {offsets = [0, 64], sizes = [2, 32], strides = [1, 1]} : vector<2x96xf32> to vector<2x32xf32>
    %157 = arith.mulf %155, %138 : vector<2x32xf32>
    %158 = arith.mulf %154, %153 : vector<2x32xf32>
    %159 = arith.addf %157, %158 : vector<2x32xf32>
    %160 = math.tanh %159 : vector<2x32xf32>
    %161 = arith.mulf %156, %160 : vector<2x32xf32>
    %162 = vector.extract_strided_slice %8 {offsets = [0, 7, 0], sizes = [2, 1, 128], strides = [1, 1, 1]} : vector<2x8x128xf32> to vector<2x1x128xf32>
    %163 = vector.shape_cast %162 : vector<2x1x128xf32> to vector<2x128xf32>
    %164 = arith.truncf %161 : vector<2x32xf32> to vector<2x32xbf16>
    %cst_27 = arith.constant dense<0.000000e+00> : vector<2x128xf32>
    %165 = tpu.matmul %164, %10, %cst_27 {dimension_numbers = #tpu.dot_dimension_numbers<[1], [0], [0], [1], [0, 0, 1, 1], [], []>} : vector<2x32xbf16>, vector<32x128xbf16>, vector<2x128xf32> -> vector<2x128xf32>
    %166 = arith.addf %163, %165 : vector<2x128xf32>
    %167 = vector.extract_strided_slice %166 {offsets = [0, 0], sizes = [2, 96], strides = [1, 1]} : vector<2x128xf32> to vector<2x96xf32>
    %168 = arith.negf %167 : vector<2x96xf32>
    %169 = math.exp %168 : vector<2x96xf32>
    %cst_28 = arith.constant 1.000000e+00 : f32
    %170 = vector.broadcast %cst_28 : f32 to vector<2x96xf32>
    %171 = arith.addf %170, %169 : vector<2x96xf32>
    %172 = arith.divf %170, %171 : vector<2x96xf32>
    %173 = vector.extract_strided_slice %166 {offsets = [0, 96], sizes = [2, 32], strides = [1, 1]} : vector<2x128xf32> to vector<2x32xf32>
    %174 = math.tanh %173 : vector<2x32xf32>
    %175 = vector.extract_strided_slice %172 {offsets = [0, 0], sizes = [2, 32], strides = [1, 1]} : vector<2x96xf32> to vector<2x32xf32>
    %176 = vector.extract_strided_slice %172 {offsets = [0, 32], sizes = [2, 32], strides = [1, 1]} : vector<2x96xf32> to vector<2x32xf32>
    %177 = vector.extract_strided_slice %172 {offsets = [0, 64], sizes = [2, 32], strides = [1, 1]} : vector<2x96xf32> to vector<2x32xf32>
    %178 = arith.mulf %176, %159 : vector<2x32xf32>
    %179 = arith.mulf %175, %174 : vector<2x32xf32>
    %180 = arith.addf %178, %179 : vector<2x32xf32>
    %181 = math.tanh %180 : vector<2x32xf32>
    %182 = arith.mulf %177, %181 : vector<2x32xf32>
    %183 = arith.truncf %182 : vector<2x32xf32> to vector<2x32xbf16>
    %c0_29 = arith.constant 0 : index
    %c0_30 = arith.constant 0 : index
    %184 = vector.load %arg6[%c0_29, %c0_30] : memref<32x4xf32, #tpu.memory_space<vmem>>, vector<32x4xf32>
    %185 = arith.truncf %184 : vector<32x4xf32> to vector<32x4xbf16>
    %cst_31 = arith.constant dense<0.000000e+00> : vector<2x4xf32>
    %186 = tpu.matmul %183, %185, %cst_31 {dimension_numbers = #tpu.dot_dimension_numbers<[1], [0], [0], [1], [0, 0, 1, 1], [], []>} : vector<2x32xbf16>, vector<32x4xbf16>, vector<2x4xf32> -> vector<2x4xf32>
    %c0_32 = arith.constant 0 : index
    %c0_33 = arith.constant 0 : index
    %187 = vector.load %arg7[%c0_32, %c0_33] : memref<1x4xf32, #tpu.memory_space<vmem>>, vector<1x4xf32>
    %188 = vector.broadcast %187 : vector<1x4xf32> to vector<2x4xf32>
    %189 = arith.addf %186, %188 : vector<2x4xf32>
    %c0_34 = arith.constant 0 : index
    %c0_35 = arith.constant 0 : index
    %c0_36 = arith.constant 0 : index
    %190 = vector.load %arg8[%c0_34, %c0_35, %c0_36] : memref<1x2x4xf32, #tpu.memory_space<vmem>>, vector<1x2x4xf32>
    %191 = vector.shape_cast %190 : vector<1x2x4xf32> to vector<2x4xf32>
    %192 = vector.shape_cast %189 : vector<2x4xf32> to vector<1x2x4xf32>
    tpu.vector_store %arg8[%c0_34, %c0_35, %c0_36], %192 {strides = array<i32>} : memref<1x2x4xf32, #tpu.memory_space<vmem>>, vector<1x2x4xf32>,
    return
  }
}

</mosaic_0001>

<llo_original>
// kernel: tpu_custom_call.1
$region0: #{tpu_custom_call.1}
  #allocation0 [shape = 'u32[]', space=smem, size = 0x4, offset = 0x4, fixed_abs, tag = 'smem constant byte address 0x4 - core index']
  #allocation1 [shape = 'u32[144,128]{1,0:T(1,128)}', space=vmem, size = 0x12000, scoped, tag = 'internal scratch']
  %s0 = inlined_call_operand.vmem [shape: f32[16,4], index: 0, kind: input, shape index: {}]
  %s1 = inlined_call_operand.vmem [shape: f32[1,2,32], index: 1, kind: input, shape index: {}]
  %s2 = inlined_call_operand.vmem [shape: f32[1,2,32], index: 2, kind: input, shape index: {}]
  %s3 = inlined_call_operand.vmem [shape: f32[4,128], index: 3, kind: input, shape index: {}]
  %s4 = inlined_call_operand.vmem [shape: f32[32,128], index: 4, kind: input, shape index: {}]
  %s5 = inlined_call_operand.vmem [shape: f32[1,128], index: 5, kind: input, shape index: {}]
  %s6 = inlined_call_operand.vmem [shape: f32[32,4], index: 6, kind: input, shape index: {}]
  %s7 = inlined_call_operand.vmem [shape: f32[1,4], index: 7, kind: input, shape index: {}]
  %s8 = inlined_call_operand.hbm [shape: f32[1,2,4], index: 8, kind: output, shape index: {}]
  %s9 = sld [smem:[#allocation0]]
  $region42: #{tpu_custom_call.1} parent=0
    _
  %s11 = ssub.s32 1, %s9
  %s12 = scalar_select 0, %s11, %s9
  $region1: #{tpu_custom_call.1} parent=0
    #allocation2 [shape = 'u8[1024]{0}', space=vmem, size = 0x400, scoped, tag = 'output window, operand 0, single buffered']
    #allocation3 [shape = 's32[1]{0}', space=sflag, size = 0x4, scoped, tag = 'scoped memory for tpu_custom_call.1']
    %13 = vsyncpa [#allocation3], 0
    // Predicated region
    $region2: #{tpu_custom_call.1} parent=1 // pred_check
      _
    $region3: #{tpu_custom_call.1} parent=1 // pred_check_branch
      %15 = sbr.rel (0) target = $region5
    $region4: #{tpu_custom_call.1} parent=1 // pred_region
      _
    $region5: #{tpu_custom_call.1} parent=1 // pred_fallthru
      _
    // Predicated region
    $region6: #{tpu_custom_call.1} parent=1 // pred_check
      _
    $region7: #{tpu_custom_call.1} parent=1 // pred_check_branch
      %17 = sbr.rel (0) target = $region9
    $region8: #{tpu_custom_call.1} parent=1 // pred_region
      _
    $region9: #{tpu_custom_call.1} parent=1 // pred_fallthru
      _
    // Predicated region
    $region10: #{tpu_custom_call.1} parent=1 // pred_check
      _
    $region11: #{tpu_custom_call.1} parent=1 // pred_check_branch
      %19 = sbr.rel (0) target = $region13
    $region12: #{tpu_custom_call.1} parent=1 // pred_region
      _
    $region13: #{tpu_custom_call.1} parent=1 // pred_fallthru
      _
    // Predicated region
    $region14: #{tpu_custom_call.1} parent=1 // pred_check
      _
    $region15: #{tpu_custom_call.1} parent=1 // pred_check_branch
      %21 = sbr.rel (0) target = $region17
    $region16: #{tpu_custom_call.1} parent=1 // pred_region
      _
    $region17: #{tpu_custom_call.1} parent=1 // pred_fallthru
      _
    // Predicated region
    $region18: #{tpu_custom_call.1} parent=1 // pred_check
      _
    $region19: #{tpu_custom_call.1} parent=1 // pred_check_branch
      %23 = sbr.rel (0) target = $region21
    $region20: #{tpu_custom_call.1} parent=1 // pred_region
      _
    $region21: #{tpu_custom_call.1} parent=1 // pred_fallthru
      _
    // Predicated region
    $region22: #{tpu_custom_call.1} parent=1 // pred_check
      _
    $region23: #{tpu_custom_call.1} parent=1 // pred_check_branch
      %25 = sbr.rel (0) target = $region25
    $region24: #{tpu_custom_call.1} parent=1 // pred_region
      _
    $region25: #{tpu_custom_call.1} parent=1 // pred_fallthru
      _
    // Predicated region
    $region26: #{tpu_custom_call.1} parent=1 // pred_check
      _
    $region27: #{tpu_custom_call.1} parent=1 // pred_check_branch
      %27 = sbr.rel (0) target = $region29
    $region28: #{tpu_custom_call.1} parent=1 // pred_region
      _
    $region29: #{tpu_custom_call.1} parent=1 // pred_fallthru
      _
    // Predicated region
    $region30: #{tpu_custom_call.1} parent=1 // pred_check
      _
    $region31: #{tpu_custom_call.1} parent=1 // pred_check_branch
      %29 = sbr.rel (0) target = $region33
    $region32: #{tpu_custom_call.1} parent=1 // pred_region
      _
    $region33: #{tpu_custom_call.1} parent=1 // pred_fallthru
      _
    %v31 = vld [vmem:[%s0] sm:$0xff]
    %v32 = vld [vmem:[%s0 + $0x8] sm:$0xff]
    %v33 = vpack.c.bf16 %v32, %v31
    %v34 = vld [vmem:[%s3] sm:$0xf]
    %v35 = vpack.c.bf16 %v34, %v34
    %v36 = vld [vmem:[%s5] sm:$0x1]
    %v38 = vlaneseq
    %v39 = vshrl.u32 %v38, 7
    %v40 = vsub.s32 0, %v39
    %v41 = vrot.slane %v36, %v40
    %vm43 = vcmask 31744
    %v45 = vsel %vm43, %v33, 0
    %vm47 = vcmask 1041408
    %v49 = vsel %vm47, %v35, 0
    %51 = vmatprep.subr.bf16.mxu0 0
    %52 = vmatpush1.bf16.msra.mxu0 %v49
    %53 = vmatprep.subr.bf16.mxu0 0
    %54 = vmatpush1.bf16.msra.mxu0 0
    %55 = vmatprep.subr.bf16.mxu0 0
    %56 = vmatpush1.bf16.msra.mxu0 0
    %57 = vmatprep.subr.bf16.mxu0 0
    %58 = vmatpush1.bf16.msra.mxu0 0
    %59 = vmatprep.subr.bf16.mxu0 0
    %60 = vmatpush1.bf16.msra.mxu0 0
    %61 = vmatprep.subr.bf16.mxu0 0
    %62 = vmatpush1.bf16.msra.mxu0 0
    %63 = vmatprep.subr.bf16.mxu0 0
    %64 = vmatpush1.bf16.msra.mxu0 0
    %65 = vmatprep.subr.bf16.mxu0 0
    %66 = vmatpush1.bf16.msra.mxu0 0
    %67 = vmatprep.subr.bf16.mxu0 0
    %68 = vmatpush1.bf16.msra.mxu0 0
    %69 = vmatprep.subr.bf16.mxu0 0
    %70 = vmatpush1.bf16.msra.mxu0 0
    %71 = vmatprep.subr.bf16.mxu0 0
    %72 = vmatpush1.bf16.msra.mxu0 0
    %73 = vmatprep.subr.bf16.mxu0 0
    %74 = vmatpush1.bf16.msra.mxu0 0
    %75 = vmatprep.subr.bf16.mxu0 0
    %76 = vmatpush1.bf16.msra.mxu0 0
    %77 = vmatprep.subr.bf16.mxu0 0
    %78 = vmatpush1.bf16.msra.mxu0 0
    %79 = vmatprep.subr.bf16.mxu0 0
    %80 = vmatpush1.bf16.msra.mxu0 0
    %81 = vmatprep.subr.bf16.mxu0 0
    %82 = vmatpush1.bf16.msra.mxu0 0
    %83 = vmatprep.mubr.bf16.mxu0 0
    %84 = vmatmul.mubr.bf16.gmra.mrb[0].mxu0 %v45
    %v85 = vpop.f32.mrb[0].mxu0
    %v86 = vadd.f32 %v41, %v85
    %v87 = vpop.f32.mrb[0].mxu0
    %v88 = vpop.f32.mrb[0].mxu0
    %v89 = vadd.f32 %v41, %v88
    %v90 = vpop.f32.mrb[0].mxu0
    %91 = vdwg.mxu0
    %v92 = vld [vmem:[%s4] sm:$0xff]
    %v93 = vld [vmem:[%s4 + $0x8] sm:$0xff]
    %v94 = vld [vmem:[%s4 + $0x10] sm:$0xff]
    %v95 = vld [vmem:[%s4 + $0x18] sm:$0xff]
    %v96 = vpack.c.bf16 %v93, %v92
    %v97 = vpack.c.bf16 %v95, %v94
    %v98 = vld [vmem:[%s1] sm:$0x3]
    %v99 = vld [vmem:[%s2] sm:$0x3]
    %v100 = vpack.c.bf16 %v98, %v98
    %vm101 = vcmask 261120
    %v103 = vsel %vm101, %v100, 0
    %105 = vmatprep.subr.bf16.mxu0 0
    %106 = vmatpush1.bf16.msra.mxu0 %v96
    %107 = vmatprep.subr.bf16.mxu0 0
    %108 = vmatpush1.bf16.msra.mxu0 %v97
    %109 = vmatprep.subr.bf16.mxu0 0
    %110 = vmatpush1.bf16.msra.mxu0 0
    %111 = vmatprep.subr.bf16.mxu0 0
    %112 = vmatpush1.bf16.msra.mxu0 0
    %113 = vmatprep.subr.bf16.mxu0 0
    %114 = vmatpush1.bf16.msra.mxu0 0
    %115 = vmatprep.subr.bf16.mxu0 0
    %116 = vmatpush1.bf16.msra.mxu0 0
    %117 = vmatprep.subr.bf16.mxu0 0
    %118 = vmatpush1.bf16.msra.mxu0 0
    %119 = vmatprep.subr.bf16.mxu0 0
    %120 = vmatpush1.bf16.msra.mxu0 0
    %121 = vmatprep.subr.bf16.mxu0 0
    %122 = vmatpush1.bf16.msra.mxu0 0
    %123 = vmatprep.subr.bf16.mxu0 0
    %124 = vmatpush1.bf16.msra.mxu0 0
    %125 = vmatprep.subr.bf16.mxu0 0
    %126 = vmatpush1.bf16.msra.mxu0 0
    %127 = vmatprep.subr.bf16.mxu0 0
    %128 = vmatpush1.bf16.msra.mxu0 0
    %129 = vmatprep.subr.bf16.mxu0 0
    %130 = vmatpush1.bf16.msra.mxu0 0
    %131 = vmatprep.subr.bf16.mxu0 0
    %132 = vmatpush1.bf16.msra.mxu0 0
    %133 = vmatprep.subr.bf16.mxu0 0
    %134 = vmatpush1.bf16.msra.mxu0 0
    %135 = vmatprep.subr.bf16.mxu0 0
    %136 = vmatpush1.bf16.msra.mxu0 0
    %137 = vmatprep.mubr.bf16.mxu0 0
    %138 = vmatmul.mubr.bf16.gmra.mrb[0].mxu0 %v103
    %v139 = vpop.f32.mrb[0].mxu0
    %v140 = vadd.f32 0.0, %v139
    %v141 = vpop.f32.mrb[0].mxu0
    %v142 = vpop.f32.mrb[0].mxu0
    %v143 = vpop.f32.mrb[0].mxu0
    %144 = vdwg.mxu0
    %v146 = vrot.slane %v140, 1
    %v149 = vadd.f32 %v86, %v140
    %v150 = vadd.f32 %v89, %v146
    %v151 = vxor.u32 %v149, 2147483648
    %v152 = vxor.u32 %v150, 2147483648
    %v153 = vmul.f32 %v151, 1.442695
    %v154 = vpow.pop %v153
    %v155 = vmul.f32 %v152, 1.442695
    %v156 = vpow.pop %v155
    %v157 = vadd.f32 %v154, 1.0
    %v158 = vadd.f32 %v156, 1.0
    %v159 = vrcp.pop %v157
    %v160 = vmul.f32 1.0, %v159
    %v161 = vrcp.pop %v158
    %v162 = vmul.f32 1.0, %v161
    %v163 = vtanh.pop %v149
    %v164 = vtanh.pop %v150
    %v166 = vrot.slane %v99, 1
    %167 = vrot.lane.b32.xlu0 %v99, 32
    %v168 = vpop.permute.xlu0 %167
    %169 = vrot.lane.b32.xlu0 %v166, 32
    %v170 = vpop.permute.xlu0 %169
    %v173 = vmul.f32 %v160, %v168
    %v174 = vmul.f32 %v162, %v170
    %177 = vrot.lane.b32.xlu0 %v163, 32
    %v178 = vpop.permute.xlu0 %177
    %179 = vrot.lane.b32.xlu0 %v164, 32
    %v180 = vpop.permute.xlu0 %179
    %v183 = vmul.f32 %v160, %v178
    %v184 = vmul.f32 %v162, %v180
    %187 = vrot.lane.b32.xlu0 %v183, 32
    %v188 = vpop.permute.xlu0 %187
    %189 = vrot.lane.b32.xlu0 %v184, 32
    %v190 = vpop.permute.xlu0 %189
    %v193 = vadd.f32 %v173, %v188
    %v194 = vadd.f32 %v174, %v190
    %v195 = vtanh.pop %v193
    %v196 = vtanh.pop %v194
    %199 = vrot.lane.b32.xlu0 %v195, 32
    %v200 = vpop.permute.xlu0 %199
    %201 = vrot.lane.b32.xlu0 %v196, 32
    %v202 = vpop.permute.xlu0 %201
    %v205 = vmul.f32 %v160, %v200
    %v206 = vmul.f32 %v162, %v202
    %v207 = vpack.c.bf16 %v205, %v205
    %v208 = vpack.c.bf16 %v206, %v206
    %v211 = vunpack.c.l.b16 %v207
    %v212 = vunpack.c.l.b16 %v208
    %v213 = vrot.slane %v212, 7
    %vm214 = vcmask 1041409
    %v215 = vsel %vm214, %v213, %v211
    %v216 = vpack.c.b16 %v215, %v215
    %217 = vrot.lane.b32.xlu0 %v216, 64
    %v218 = vpop.permute.xlu0 %217
    %v220 = vsel %vm101, %v218, 0
    %222 = vmatprep.subr.bf16.mxu0 0
    %223 = vmatpush1.bf16.msra.mxu0 %v96
    %224 = vmatprep.subr.bf16.mxu0 0
    %225 = vmatpush1.bf16.msra.mxu0 %v97
    %226 = vmatprep.subr.bf16.mxu0 0
    %227 = vmatpush1.bf16.msra.mxu0 0
    %228 = vmatprep.subr.bf16.mxu0 0
    %229 = vmatpush1.bf16.msra.mxu0 0
    %230 = vmatprep.subr.bf16.mxu0 0
    %231 = vmatpush1.bf16.msra.mxu0 0
    %232 = vmatprep.subr.bf16.mxu0 0
    %233 = vmatpush1.bf16.msra.mxu0 0
    %234 = vmatprep.subr.bf16.mxu0 0
    %235 = vmatpush1.bf16.msra.mxu0 0
    %236 = vmatprep.subr.bf16.mxu0 0
    %237 = vmatpush1.bf16.msra.mxu0 0
    %238 = vmatprep.subr.bf16.mxu0 0
    %239 = vmatpush1.bf16.msra.mxu0 0
    %240 = vmatprep.subr.bf16.mxu0 0
    %241 = vmatpush1.bf16.msra.mxu0 0
    %242 = vmatprep.subr.bf16.mxu0 0
    %243 = vmatpush1.bf16.msra.mxu0 0
    %244 = vmatprep.subr.bf16.mxu0 0
    %245 = vmatpush1.bf16.msra.mxu0 0
    %246 = vmatprep.subr.bf16.mxu0 0
    %247 = vmatpush1.bf16.msra.mxu0 0
    %248 = vmatprep.subr.bf16.mxu0 0
    %249 = vmatpush1.bf16.msra.mxu0 0
    %250 = vmatprep.subr.bf16.mxu0 0
    %251 = vmatpush1.bf16.msra.mxu0 0
    %252 = vmatprep.subr.bf16.mxu0 0
    %253 = vmatpush1.bf16.msra.mxu0 0
    %254 = vmatprep.mubr.bf16.mxu0 0
    %255 = vmatmul.mubr.bf16.gmra.mrb[0].mxu0 %v220
    %v256 = vpop.f32.mrb[0].mxu0
    %v257 = vadd.f32 0.0, %v256
    %v258 = vpop.f32.mrb[0].mxu0
    %v259 = vpop.f32.mrb[0].mxu0
    %v260 = vpop.f32.mrb[0].mxu0
    %261 = vdwg.mxu0
    %v263 = vrot.slane %v257, 7
    %v266 = vadd.f32 %v86, %v263
    %v267 = vadd.f32 %v89, %v257
    %v268 = vxor.u32 %v266, 2147483648
    %v269 = vxor.u32 %v267, 2147483648
    %v270 = vmul.f32 %v268, 1.442695
    %v271 = vpow.pop %v270
    %v272 = vmul.f32 %v269, 1.442695
    %v273 = vpow.pop %v272
    %v274 = vadd.f32 %v271, 1.0
    %v275 = vadd.f32 %v273, 1.0
    %v276 = vrcp.pop %v274
    %v277 = vmul.f32 1.0, %v276
    %v278 = vrcp.pop %v275
    %v279 = vmul.f32 1.0, %v278
    %v280 = vtanh.pop %v266
    %v281 = vtanh.pop %v267
    %v284 = vrot.slane %v193, 7
    %v285 = vrot.slane %v194, 7
    %v288 = vmul.f32 %v277, %v284
    %v289 = vmul.f32 %v279, %v285
    %292 = vrot.lane.b32.xlu0 %v280, 32
    %v293 = vpop.permute.xlu0 %292
    %294 = vrot.lane.b32.xlu0 %v281, 32
    %v295 = vpop.permute.xlu0 %294
    %v298 = vmul.f32 %v277, %v293
    %v299 = vmul.f32 %v279, %v295
    %302 = vrot.lane.b32.xlu0 %v298, 32
    %v303 = vpop.permute.xlu0 %302
    %304 = vrot.lane.b32.xlu0 %v299, 32
    %v305 = vpop.permute.xlu0 %304
    %v308 = vadd.f32 %v288, %v303
    %v309 = vadd.f32 %v289, %v305
    %v310 = vtanh.pop %v308
    %v311 = vtanh.pop %v309
    %314 = vrot.lane.b32.xlu0 %v310, 32
    %v315 = vpop.permute.xlu0 %314
    %316 = vrot.lane.b32.xlu0 %v311, 32
    %v317 = vpop.permute.xlu0 %316
    %v320 = vmul.f32 %v277, %v315
    %v321 = vmul.f32 %v279, %v317
    %v322 = vpack.c.bf16 %v320, %v320
    %v323 = vpack.c.bf16 %v321, %v321
    %v326 = vunpack.c.l.b16 %v322
    %v327 = vunpack.c.l.b16 %v323
    %v328 = vrot.slane %v326, 1
    %v329 = vsel %vm214, %v327, %v328
    %v330 = vpack.c.b16 %v329, %v329
    %331 = vrot.lane.b32.xlu0 %v330, 64
    %v332 = vpop.permute.xlu0 %331
    %v334 = vsel %vm101, %v332, 0
    %336 = vmatprep.subr.bf16.mxu0 0
    %337 = vmatpush1.bf16.msra.mxu0 %v96
    %338 = vmatprep.subr.bf16.mxu0 0
    %339 = vmatpush1.bf16.msra.mxu0 %v97
    %340 = vmatprep.subr.bf16.mxu0 0
    %341 = vmatpush1.bf16.msra.mxu0 0
    %342 = vmatprep.subr.bf16.mxu0 0
    %343 = vmatpush1.bf16.msra.mxu0 0
    %344 = vmatprep.subr.bf16.mxu0 0
    %345 = vmatpush1.bf16.msra.mxu0 0
    %346 = vmatprep.subr.bf16.mxu0 0
    %347 = vmatpush1.bf16.msra.mxu0 0
    %348 = vmatprep.subr.bf16.mxu0 0
    %349 = vmatpush1.bf16.msra.mxu0 0
    %350 = vmatprep.subr.bf16.mxu0 0
    %351 = vmatpush1.bf16.msra.mxu0 0
    %352 = vmatprep.subr.bf16.mxu0 0
    %353 = vmatpush1.bf16.msra.mxu0 0
    %354 = vmatprep.subr.bf16.mxu0 0
    %355 = vmatpush1.bf16.msra.mxu0 0
    %356 = vmatprep.subr.bf16.mxu0 0
    %357 = vmatpush1.bf16.msra.mxu0 0
    %358 = vmatprep.subr.bf16.mxu0 0
    %359 = vmatpush1.bf16.msra.mxu0 0
    %360 = vmatprep.subr.bf16.mxu0 0
    %361 = vmatpush1.bf16.msra.mxu0 0
    %362 = vmatprep.subr.bf16.mxu0 0
    %363 = vmatpush1.bf16.msra.mxu0 0
    %364 = vmatprep.subr.bf16.mxu0 0
    %365 = vmatpush1.bf16.msra.mxu0 0
    %366 = vmatprep.subr.bf16.mxu0 0
    %367 = vmatpush1.bf16.msra.mxu0 0
    %368 = vmatprep.mubr.bf16.mxu0 0
    %369 = vmatmul.mubr.bf16.gmra.mrb[0].mxu0 %v334
    %v370 = vpop.f32.mrb[0].mxu0
    %v371 = vadd.f32 0.0, %v370
    %v372 = vpop.f32.mrb[0].mxu0
    %v373 = vpop.f32.mrb[0].mxu0
    %v374 = vpop.f32.mrb[0].mxu0
    %375 = vdwg.mxu0
    %v377 = vrot.slane %v371, 6
    %v378 = vrot.slane %v371, 7
    %v381 = vadd.f32 %v86, %v377
    %v382 = vadd.f32 %v89, %v378
    %v383 = vxor.u32 %v381, 2147483648
    %v384 = vxor.u32 %v382, 2147483648
    %v385 = vmul.f32 %v383, 1.442695
    %v386 = vpow.pop %v385
    %v387 = vmul.f32 %v384, 1.442695
    %v388 = vpow.pop %v387
    %v389 = vadd.f32 %v386, 1.0
    %v390 = vadd.f32 %v388, 1.0
    %v391 = vrcp.pop %v389
    %v392 = vmul.f32 1.0, %v391
    %v393 = vrcp.pop %v390
    %v394 = vmul.f32 1.0, %v393
    %v395 = vtanh.pop %v381
    %v396 = vtanh.pop %v382
    %v399 = vrot.slane %v308, 7
    %v400 = vrot.slane %v309, 7
    %v403 = vmul.f32 %v392, %v399
    %v404 = vmul.f32 %v394, %v400
    %407 = vrot.lane.b32.xlu0 %v395, 32
    %v408 = vpop.permute.xlu0 %407
    %409 = vrot.lane.b32.xlu0 %v396, 32
    %v410 = vpop.permute.xlu0 %409
    %v413 = vmul.f32 %v392, %v408
    %v414 = vmul.f32 %v394, %v410
    %417 = vrot.lane.b32.xlu0 %v413, 32
    %v418 = vpop.permute.xlu0 %417
    %419 = vrot.lane.b32.xlu0 %v414, 32
    %v420 = vpop.permute.xlu0 %419
    %v423 = vadd.f32 %v403, %v418
    %v424 = vadd.f32 %v404, %v420
    %v425 = vtanh.pop %v423
    %v426 = vtanh.pop %v424
    %429 = vrot.lane.b32.xlu0 %v425, 32
    %v430 = vpop.permute.xlu0 %429
    %431 = vrot.lane.b32.xlu0 %v426, 32
    %v432 = vpop.permute.xlu0 %431
    %v435 = vmul.f32 %v392, %v430
    %v436 = vmul.f32 %v394, %v432
    %v437 = vpack.c.bf16 %v435, %v435
    %v438 = vpack.c.bf16 %v436, %v436
    %v441 = vunpack.c.l.b16 %v437
    %v442 = vunpack.c.l.b16 %v438
    %v443 = vrot.slane %v441, 2
    %v444 = vrot.slane %v442, 1
    %v445 = vsel %vm214, %v444, %v443
    %v446 = vpack.c.b16 %v445, %v445
    %447 = vrot.lane.b32.xlu0 %v446, 64
    %v448 = vpop.permute.xlu0 %447
    %v450 = vsel %vm101, %v448, 0
    %452 = vmatprep.subr.bf16.mxu0 0
    %453 = vmatpush1.bf16.msra.mxu0 %v96
    %454 = vmatprep.subr.bf16.mxu0 0
    %455 = vmatpush1.bf16.msra.mxu0 %v97
    %456 = vmatprep.subr.bf16.mxu0 0
    %457 = vmatpush1.bf16.msra.mxu0 0
    %458 = vmatprep.subr.bf16.mxu0 0
    %459 = vmatpush1.bf16.msra.mxu0 0
    %460 = vmatprep.subr.bf16.mxu0 0
    %461 = vmatpush1.bf16.msra.mxu0 0
    %462 = vmatprep.subr.bf16.mxu0 0
    %463 = vmatpush1.bf16.msra.mxu0 0
    %464 = vmatprep.subr.bf16.mxu0 0
    %465 = vmatpush1.bf16.msra.mxu0 0
    %466 = vmatprep.subr.bf16.mxu0 0
    %467 = vmatpush1.bf16.msra.mxu0 0
    %468 = vmatprep.subr.bf16.mxu0 0
    %469 = vmatpush1.bf16.msra.mxu0 0
    %470 = vmatprep.subr.bf16.mxu0 0
    %471 = vmatpush1.bf16.msra.mxu0 0
    %472 = vmatprep.subr.bf16.mxu0 0
    %473 = vmatpush1.bf16.msra.mxu0 0
    %474 = vmatprep.subr.bf16.mxu0 0
    %475 = vmatpush1.bf16.msra.mxu0 0
    %476 = vmatprep.subr.bf16.mxu0 0
    %477 = vmatpush1.bf16.msra.mxu0 0
    %478 = vmatprep.subr.bf16.mxu0 0
    %479 = vmatpush1.bf16.msra.mxu0 0
    %480 = vmatprep.subr.bf16.mxu0 0
    %481 = vmatpush1.bf16.msra.mxu0 0
    %482 = vmatprep.subr.bf16.mxu0 0
    %483 = vmatpush1.bf16.msra.mxu0 0
    %484 = vmatprep.mubr.bf16.mxu0 0
    %485 = vmatmul.mubr.bf16.gmra.mrb[0].mxu0 %v450
    %v486 = vpop.f32.mrb[0].mxu0
    %v487 = vadd.f32 0.0, %v486
    %v488 = vpop.f32.mrb[0].mxu0
    %v489 = vpop.f32.mrb[0].mxu0
    %v490 = vpop.f32.mrb[0].mxu0
    %491 = vdwg.mxu0
    %v493 = vrot.slane %v487, 5
    %v494 = vrot.slane %v487, 6
    %v497 = vadd.f32 %v86, %v493
    %v498 = vadd.f32 %v89, %v494
    %v499 = vxor.u32 %v497, 2147483648
    %v500 = vxor.u32 %v498, 2147483648
    %v501 = vmul.f32 %v499, 1.442695
    %v502 = vpow.pop %v501
    %v503 = vmul.f32 %v500, 1.442695
    %v504 = vpow.pop %v503
    %v505 = vadd.f32 %v502, 1.0
    %v506 = vadd.f32 %v504, 1.0
    %v507 = vrcp.pop %v505
    %v508 = vmul.f32 1.0, %v507
    %v509 = vrcp.pop %v506
    %v510 = vmul.f32 1.0, %v509
    %v511 = vtanh.pop %v497
    %v512 = vtanh.pop %v498
    %v515 = vrot.slane %v423, 7
    %v516 = vrot.slane %v424, 7
    %v519 = vmul.f32 %v508, %v515
    %v520 = vmul.f32 %v510, %v516
    %523 = vrot.lane.b32.xlu0 %v511, 32
    %v524 = vpop.permute.xlu0 %523
    %525 = vrot.lane.b32.xlu0 %v512, 32
    %v526 = vpop.permute.xlu0 %525
    %v529 = vmul.f32 %v508, %v524
    %v530 = vmul.f32 %v510, %v526
    %533 = vrot.lane.b32.xlu0 %v529, 32
    %v534 = vpop.permute.xlu0 %533
    %535 = vrot.lane.b32.xlu0 %v530, 32
    %v536 = vpop.permute.xlu0 %535
    %v539 = vadd.f32 %v519, %v534
    %v540 = vadd.f32 %v520, %v536
    %v541 = vtanh.pop %v539
    %v542 = vtanh.pop %v540
    %545 = vrot.lane.b32.xlu0 %v541, 32
    %v546 = vpop.permute.xlu0 %545
    %547 = vrot.lane.b32.xlu0 %v542, 32
    %v548 = vpop.permute.xlu0 %547
    %v551 = vmul.f32 %v508, %v546
    %v552 = vmul.f32 %v510, %v548
    %v553 = vpack.c.bf16 %v551, %v551
    %v554 = vpack.c.bf16 %v552, %v552
    %v557 = vunpack.c.l.b16 %v553
    %v558 = vunpack.c.l.b16 %v554
    %v559 = vrot.slane %v557, 3
    %v560 = vrot.slane %v558, 2
    %v561 = vsel %vm214, %v560, %v559
    %v562 = vpack.c.b16 %v561, %v561
    %563 = vrot.lane.b32.xlu0 %v562, 64
    %v564 = vpop.permute.xlu0 %563
    %v566 = vsel %vm101, %v564, 0
    %568 = vmatprep.subr.bf16.mxu0 0
    %569 = vmatpush1.bf16.msra.mxu0 %v96
    %570 = vmatprep.subr.bf16.mxu0 0
    %571 = vmatpush1.bf16.msra.mxu0 %v97
    %572 = vmatprep.subr.bf16.mxu0 0
    %573 = vmatpush1.bf16.msra.mxu0 0
    %574 = vmatprep.subr.bf16.mxu0 0
    %575 = vmatpush1.bf16.msra.mxu0 0
    %576 = vmatprep.subr.bf16.mxu0 0
    %577 = vmatpush1.bf16.msra.mxu0 0
    %578 = vmatprep.subr.bf16.mxu0 0
    %579 = vmatpush1.bf16.msra.mxu0 0
    %580 = vmatprep.subr.bf16.mxu0 0
    %581 = vmatpush1.bf16.msra.mxu0 0
    %582 = vmatprep.subr.bf16.mxu0 0
    %583 = vmatpush1.bf16.msra.mxu0 0
    %584 = vmatprep.subr.bf16.mxu0 0
    %585 = vmatpush1.bf16.msra.mxu0 0
    %586 = vmatprep.subr.bf16.mxu0 0
    %587 = vmatpush1.bf16.msra.mxu0 0
    %588 = vmatprep.subr.bf16.mxu0 0
    %589 = vmatpush1.bf16.msra.mxu0 0
    %590 = vmatprep.subr.bf16.mxu0 0
    %591 = vmatpush1.bf16.msra.mxu0 0
    %592 = vmatprep.subr.bf16.mxu0 0
    %593 = vmatpush1.bf16.msra.mxu0 0
    %594 = vmatprep.subr.bf16.mxu0 0
    %595 = vmatpush1.bf16.msra.mxu0 0
    %596 = vmatprep.subr.bf16.mxu0 0
    %597 = vmatpush1.bf16.msra.mxu0 0
    %598 = vmatprep.subr.bf16.mxu0 0
    %599 = vmatpush1.bf16.msra.mxu0 0
    %600 = vmatprep.mubr.bf16.mxu0 0
    %601 = vmatmul.mubr.bf16.gmra.mrb[0].mxu0 %v566
    %v602 = vpop.f32.mrb[0].mxu0
    %v603 = vadd.f32 0.0, %v602
    %v604 = vpop.f32.mrb[0].mxu0
    %v605 = vpop.f32.mrb[0].mxu0
    %v606 = vpop.f32.mrb[0].mxu0
    %607 = vdwg.mxu0
    %v609 = vrot.slane %v603, 4
    %v610 = vrot.slane %v603, 5
    %v613 = vadd.f32 %v86, %v609
    %v614 = vadd.f32 %v89, %v610
    %v615 = vxor.u32 %v613, 2147483648
    %v616 = vxor.u32 %v614, 2147483648
    %v617 = vmul.f32 %v615, 1.442695
    %v618 = vpow.pop %v617
    %v619 = vmul.f32 %v616, 1.442695
    %v620 = vpow.pop %v619
    %v621 = vadd.f32 %v618, 1.0
    %v622 = vadd.f32 %v620, 1.0
    %v623 = vrcp.pop %v621
    %v624 = vmul.f32 1.0, %v623
    %v625 = vrcp.pop %v622
    %v626 = vmul.f32 1.0, %v625
    %v627 = vtanh.pop %v613
    %v628 = vtanh.pop %v614
    %v631 = vrot.slane %v539, 7
    %v632 = vrot.slane %v540, 7
    %v635 = vmul.f32 %v624, %v631
    %v636 = vmul.f32 %v626, %v632
    %639 = vrot.lane.b32.xlu0 %v627, 32
    %v640 = vpop.permute.xlu0 %639
    %641 = vrot.lane.b32.xlu0 %v628, 32
    %v642 = vpop.permute.xlu0 %641
    %v645 = vmul.f32 %v624, %v640
    %v646 = vmul.f32 %v626, %v642
    %649 = vrot.lane.b32.xlu0 %v645, 32
    %v650 = vpop.permute.xlu0 %649
    %651 = vrot.lane.b32.xlu0 %v646, 32
    %v652 = vpop.permute.xlu0 %651
    %v655 = vadd.f32 %v635, %v650
    %v656 = vadd.f32 %v636, %v652
    %v657 = vtanh.pop %v655
    %v658 = vtanh.pop %v656
    %661 = vrot.lane.b32.xlu0 %v657, 32
    %v662 = vpop.permute.xlu0 %661
    %663 = vrot.lane.b32.xlu0 %v658, 32
    %v664 = vpop.permute.xlu0 %663
    %v667 = vmul.f32 %v624, %v662
    %v668 = vmul.f32 %v626, %v664
    %v669 = vpack.c.bf16 %v667, %v667
    %v670 = vpack.c.bf16 %v668, %v668
    %v673 = vunpack.c.l.b16 %v669
    %v674 = vunpack.c.l.b16 %v670
    %v675 = vrot.slane %v673, 4
    %v676 = vrot.slane %v674, 3
    %v677 = vsel %vm214, %v676, %v675
    %v678 = vpack.c.b16 %v677, %v677
    %679 = vrot.lane.b32.xlu0 %v678, 64
    %v680 = vpop.permute.xlu0 %679
    %v682 = vsel %vm101, %v680, 0
    %684 = vmatprep.subr.bf16.mxu0 0
    %685 = vmatpush1.bf16.msra.mxu0 %v96
    %686 = vmatprep.subr.bf16.mxu0 0
    %687 = vmatpush1.bf16.msra.mxu0 %v97
    %688 = vmatprep.subr.bf16.mxu0 0
    %689 = vmatpush1.bf16.msra.mxu0 0
    %690 = vmatprep.subr.bf16.mxu0 0
    %691 = vmatpush1.bf16.msra.mxu0 0
    %692 = vmatprep.subr.bf16.mxu0 0
    %693 = vmatpush1.bf16.msra.mxu0 0
    %694 = vmatprep.subr.bf16.mxu0 0
    %695 = vmatpush1.bf16.msra.mxu0 0
    %696 = vmatprep.subr.bf16.mxu0 0
    %697 = vmatpush1.bf16.msra.mxu0 0
    %698 = vmatprep.subr.bf16.mxu0 0
    %699 = vmatpush1.bf16.msra.mxu0 0
    %700 = vmatprep.subr.bf16.mxu0 0
    %701 = vmatpush1.bf16.msra.mxu0 0
    %702 = vmatprep.subr.bf16.mxu0 0
    %703 = vmatpush1.bf16.msra.mxu0 0
    %704 = vmatprep.subr.bf16.mxu0 0
    %705 = vmatpush1.bf16.msra.mxu0 0
    %706 = vmatprep.subr.bf16.mxu0 0
    %707 = vmatpush1.bf16.msra.mxu0 0
    %708 = vmatprep.subr.bf16.mxu0 0
    %709 = vmatpush1.bf16.msra.mxu0 0
    %710 = vmatprep.subr.bf16.mxu0 0
    %711 = vmatpush1.bf16.msra.mxu0 0
    %712 = vmatprep.subr.bf16.mxu0 0
    %713 = vmatpush1.bf16.msra.mxu0 0
    %714 = vmatprep.subr.bf16.mxu0 0
    %715 = vmatpush1.bf16.msra.mxu0 0
    %716 = vmatprep.mubr.bf16.mxu0 0
    %717 = vmatmul.mubr.bf16.gmra.mrb[0].mxu0 %v682
    %v718 = vpop.f32.mrb[0].mxu0
    %v719 = vadd.f32 0.0, %v718
    %v720 = vpop.f32.mrb[0].mxu0
    %v721 = vpop.f32.mrb[0].mxu0
    %v722 = vpop.f32.mrb[0].mxu0
    %723 = vdwg.mxu0
    %v725 = vrot.slane %v719, 3
    %v726 = vrot.slane %v719, 4
    %v729 = vadd.f32 %v86, %v725
    %v730 = vadd.f32 %v89, %v726
    %v731 = vxor.u32 %v729, 2147483648
    %v732 = vxor.u32 %v730, 2147483648
    %v733 = vmul.f32 %v731, 1.442695
    %v734 = vpow.pop %v733
    %v735 = vmul.f32 %v732, 1.442695
    %v736 = vpow.pop %v735
    %v737 = vadd.f32 %v734, 1.0
    %v738 = vadd.f32 %v736, 1.0
    %v739 = vrcp.pop %v737
    %v740 = vmul.f32 1.0, %v739
    %v741 = vrcp.pop %v738
    %v742 = vmul.f32 1.0, %v741
    %v743 = vtanh.pop %v729
    %v744 = vtanh.pop %v730
    %v747 = vrot.slane %v655, 7
    %v748 = vrot.slane %v656, 7
    %v751 = vmul.f32 %v740, %v747
    %v752 = vmul.f32 %v742, %v748
    %755 = vrot.lane.b32.xlu0 %v743, 32
    %v756 = vpop.permute.xlu0 %755
    %757 = vrot.lane.b32.xlu0 %v744, 32
    %v758 = vpop.permute.xlu0 %757
    %v761 = vmul.f32 %v740, %v756
    %v762 = vmul.f32 %v742, %v758
    %765 = vrot.lane.b32.xlu0 %v761, 32
    %v766 = vpop.permute.xlu0 %765
    %767 = vrot.lane.b32.xlu0 %v762, 32
    %v768 = vpop.permute.xlu0 %767
    %v771 = vadd.f32 %v751, %v766
    %v772 = vadd.f32 %v752, %v768
    %v773 = vtanh.pop %v771
    %v774 = vtanh.pop %v772
    %777 = vrot.lane.b32.xlu0 %v773, 32
    %v778 = vpop.permute.xlu0 %777
    %779 = vrot.lane.b32.xlu0 %v774, 32
    %v780 = vpop.permute.xlu0 %779
    %v783 = vmul.f32 %v740, %v778
    %v784 = vmul.f32 %v742, %v780
    %v785 = vpack.c.bf16 %v783, %v783
    %v786 = vpack.c.bf16 %v784, %v784
    %v789 = vunpack.c.l.b16 %v785
    %v790 = vunpack.c.l.b16 %v786
    %v791 = vrot.slane %v789, 5
    %v792 = vrot.slane %v790, 4
    %v793 = vsel %vm214, %v792, %v791
    %v794 = vpack.c.b16 %v793, %v793
    %795 = vrot.lane.b32.xlu0 %v794, 64
    %v796 = vpop.permute.xlu0 %795
    %v798 = vsel %vm101, %v796, 0
    %800 = vmatprep.subr.bf16.mxu0 0
    %801 = vmatpush1.bf16.msra.mxu0 %v96
    %802 = vmatprep.subr.bf16.mxu0 0
    %803 = vmatpush1.bf16.msra.mxu0 %v97
    %804 = vmatprep.subr.bf16.mxu0 0
    %805 = vmatpush1.bf16.msra.mxu0 0
    %806 = vmatprep.subr.bf16.mxu0 0
    %807 = vmatpush1.bf16.msra.mxu0 0
    %808 = vmatprep.subr.bf16.mxu0 0
    %809 = vmatpush1.bf16.msra.mxu0 0
    %810 = vmatprep.subr.bf16.mxu0 0
    %811 = vmatpush1.bf16.msra.mxu0 0
    %812 = vmatprep.subr.bf16.mxu0 0
    %813 = vmatpush1.bf16.msra.mxu0 0
    %814 = vmatprep.subr.bf16.mxu0 0
    %815 = vmatpush1.bf16.msra.mxu0 0
    %816 = vmatprep.subr.bf16.mxu0 0
    %817 = vmatpush1.bf16.msra.mxu0 0
    %818 = vmatprep.subr.bf16.mxu0 0
    %819 = vmatpush1.bf16.msra.mxu0 0
    %820 = vmatprep.subr.bf16.mxu0 0
    %821 = vmatpush1.bf16.msra.mxu0 0
    %822 = vmatprep.subr.bf16.mxu0 0
    %823 = vmatpush1.bf16.msra.mxu0 0
    %824 = vmatprep.subr.bf16.mxu0 0
    %825 = vmatpush1.bf16.msra.mxu0 0
    %826 = vmatprep.subr.bf16.mxu0 0
    %827 = vmatpush1.bf16.msra.mxu0 0
    %828 = vmatprep.subr.bf16.mxu0 0
    %829 = vmatpush1.bf16.msra.mxu0 0
    %830 = vmatprep.subr.bf16.mxu0 0
    %831 = vmatpush1.bf16.msra.mxu0 0
    %832 = vmatprep.mubr.bf16.mxu0 0
    %833 = vmatmul.mubr.bf16.gmra.mrb[0].mxu0 %v798
    %v834 = vpop.f32.mrb[0].mxu0
    %v835 = vadd.f32 0.0, %v834
    %v836 = vpop.f32.mrb[0].mxu0
    %v837 = vpop.f32.mrb[0].mxu0
    %v838 = vpop.f32.mrb[0].mxu0
    %839 = vdwg.mxu0
    %v841 = vrot.slane %v835, 2
    %v842 = vrot.slane %v835, 3
    %v845 = vadd.f32 %v86, %v841
    %v846 = vadd.f32 %v89, %v842
    %v847 = vxor.u32 %v845, 2147483648
    %v848 = vxor.u32 %v846, 2147483648
    %v849 = vmul.f32 %v847, 1.442695
    %v850 = vpow.pop %v849
    %v851 = vmul.f32 %v848, 1.442695
    %v852 = vpow.pop %v851
    %v853 = vadd.f32 %v850, 1.0
    %v854 = vadd.f32 %v852, 1.0
    %v855 = vrcp.pop %v853
    %v856 = vmul.f32 1.0, %v855
    %v857 = vrcp.pop %v854
    %v858 = vmul.f32 1.0, %v857
    %v859 = vtanh.pop %v845
    %v860 = vtanh.pop %v846
    %v863 = vrot.slane %v771, 7
    %v864 = vrot.slane %v772, 7
    %v867 = vmul.f32 %v856, %v863
    %v868 = vmul.f32 %v858, %v864
    %871 = vrot.lane.b32.xlu0 %v859, 32
    %v872 = vpop.permute.xlu0 %871
    %873 = vrot.lane.b32.xlu0 %v860, 32
    %v874 = vpop.permute.xlu0 %873
    %v877 = vmul.f32 %v856, %v872
    %v878 = vmul.f32 %v858, %v874
    %881 = vrot.lane.b32.xlu0 %v877, 32
    %v882 = vpop.permute.xlu0 %881
    %883 = vrot.lane.b32.xlu0 %v878, 32
    %v884 = vpop.permute.xlu0 %883
    %v887 = vadd.f32 %v867, %v882
    %v888 = vadd.f32 %v868, %v884
    %v889 = vtanh.pop %v887
    %v890 = vtanh.pop %v888
    %893 = vrot.lane.b32.xlu0 %v889, 32
    %v894 = vpop.permute.xlu0 %893
    %895 = vrot.lane.b32.xlu0 %v890, 32
    %v896 = vpop.permute.xlu0 %895
    %v899 = vmul.f32 %v856, %v894
    %v900 = vmul.f32 %v858, %v896
    %v901 = vpack.c.bf16 %v899, %v899
    %v902 = vpack.c.bf16 %v900, %v900
    %v905 = vunpack.c.l.b16 %v901
    %v906 = vunpack.c.l.b16 %v902
    %v907 = vrot.slane %v905, 6
    %v908 = vrot.slane %v906, 5
    %v909 = vsel %vm214, %v908, %v907
    %v910 = vpack.c.b16 %v909, %v909
    %911 = vrot.lane.b32.xlu0 %v910, 64
    %v912 = vpop.permute.xlu0 %911
    %v914 = vsel %vm101, %v912, 0
    %916 = vmatprep.subr.bf16.mxu0 0
    %917 = vmatpush1.bf16.msra.mxu0 %v96
    %918 = vmatprep.subr.bf16.mxu0 0
    %919 = vmatpush1.bf16.msra.mxu0 %v97
    %920 = vmatprep.subr.bf16.mxu0 0
    %921 = vmatpush1.bf16.msra.mxu0 0
    %922 = vmatprep.subr.bf16.mxu0 0
    %923 = vmatpush1.bf16.msra.mxu0 0
    %924 = vmatprep.subr.bf16.mxu0 0
    %925 = vmatpush1.bf16.msra.mxu0 0
    %926 = vmatprep.subr.bf16.mxu0 0
    %927 = vmatpush1.bf16.msra.mxu0 0
    %928 = vmatprep.subr.bf16.mxu0 0
    %929 = vmatpush1.bf16.msra.mxu0 0
    %930 = vmatprep.subr.bf16.mxu0 0
    %931 = vmatpush1.bf16.msra.mxu0 0
    %932 = vmatprep.subr.bf16.mxu0 0
    %933 = vmatpush1.bf16.msra.mxu0 0
    %934 = vmatprep.subr.bf16.mxu0 0
    %935 = vmatpush1.bf16.msra.mxu0 0
    %936 = vmatprep.subr.bf16.mxu0 0
    %937 = vmatpush1.bf16.msra.mxu0 0
    %938 = vmatprep.subr.bf16.mxu0 0
    %939 = vmatpush1.bf16.msra.mxu0 0
    %940 = vmatprep.subr.bf16.mxu0 0
    %941 = vmatpush1.bf16.msra.mxu0 0
    %942 = vmatprep.subr.bf16.mxu0 0
    %943 = vmatpush1.bf16.msra.mxu0 0
    %944 = vmatprep.subr.bf16.mxu0 0
    %945 = vmatpush1.bf16.msra.mxu0 0
    %946 = vmatprep.subr.bf16.mxu0 0
    %947 = vmatpush1.bf16.msra.mxu0 0
    %948 = vmatprep.mubr.bf16.mxu0 0
    %949 = vmatmul.mubr.bf16.gmra.mrb[0].mxu0 %v914
    %v950 = vpop.f32.mrb[0].mxu0
    %v951 = vadd.f32 0.0, %v950
    %v952 = vpop.f32.mrb[0].mxu0
    %v953 = vpop.f32.mrb[0].mxu0
    %v954 = vpop.f32.mrb[0].mxu0
    %955 = vdwg.mxu0
    %v957 = vrot.slane %v951, 1
    %v958 = vrot.slane %v951, 2
    %v961 = vadd.f32 %v86, %v957
    %v962 = vadd.f32 %v89, %v958
    %v963 = vxor.u32 %v961, 2147483648
    %v964 = vxor.u32 %v962, 2147483648
    %v965 = vmul.f32 %v963, 1.442695
    %v966 = vpow.pop %v965
    %v967 = vmul.f32 %v964, 1.442695
    %v968 = vpow.pop %v967
    %v969 = vadd.f32 %v966, 1.0
    %v970 = vadd.f32 %v968, 1.0
    %v971 = vrcp.pop %v969
    %v972 = vmul.f32 1.0, %v971
    %v973 = vrcp.pop %v970
    %v974 = vmul.f32 1.0, %v973
    %v975 = vtanh.pop %v961
    %v976 = vtanh.pop %v962
    %v979 = vrot.slane %v887, 7
    %v980 = vrot.slane %v888, 7
    %v983 = vmul.f32 %v972, %v979
    %v984 = vmul.f32 %v974, %v980
    %987 = vrot.lane.b32.xlu0 %v975, 32
    %v988 = vpop.permute.xlu0 %987
    %989 = vrot.lane.b32.xlu0 %v976, 32
    %v990 = vpop.permute.xlu0 %989
    %v993 = vmul.f32 %v972, %v988
    %v994 = vmul.f32 %v974, %v990
    %997 = vrot.lane.b32.xlu0 %v993, 32
    %v998 = vpop.permute.xlu0 %997
    %999 = vrot.lane.b32.xlu0 %v994, 32
    %v1000 = vpop.permute.xlu0 %999
    %v1003 = vadd.f32 %v983, %v998
    %v1004 = vadd.f32 %v984, %v1000
    %v1005 = vtanh.pop %v1003
    %v1006 = vtanh.pop %v1004
    %1009 = vrot.lane.b32.xlu0 %v1005, 32
    %v1010 = vpop.permute.xlu0 %1009
    %1011 = vrot.lane.b32.xlu0 %v1006, 32
    %v1012 = vpop.permute.xlu0 %1011
    %v1015 = vmul.f32 %v972, %v1010
    %v1016 = vmul.f32 %v974, %v1012
    %v1017 = vpack.c.bf16 %v1015, %v1015
    %v1018 = vpack.c.bf16 %v1016, %v1016
    %v1019 = vld [vmem:[%s6] sm:$0xff]
    %v1020 = vld [vmem:[%s6 + $0x8] sm:$0xff]
    %v1021 = vld [vmem:[%s6 + $0x10] sm:$0xff]
    %v1022 = vld [vmem:[%s6 + $0x18] sm:$0xff]
    %v1023 = vpack.c.bf16 %v1020, %v1019
    %v1024 = vpack.c.bf16 %v1022, %v1021
    %v1025 = vld [vmem:[%s7] sm:$0x1]
    %v1027 = vlaneseq
    %v1028 = vshrl.u32 %v1027, 7
    %v1029 = vsub.s32 0, %v1028
    %v1030 = vrot.slane %v1025, %v1029
    %v1034 = vunpack.c.l.b16 %v1017
    %v1035 = vunpack.c.l.b16 %v1018
    %v1036 = vrot.slane %v1034, 7
    %v1037 = vrot.slane %v1035, 6
    %v1038 = vsel %vm214, %v1037, %v1036
    %v1039 = vpack.c.b16 %v1038, %v1038
    %1040 = vrot.lane.b32.xlu0 %v1039, 64
    %v1041 = vpop.permute.xlu0 %1040
    %v1043 = vsel %vm101, %v1041, 0
    %1045 = vmatprep.subr.bf16.mxu0 0
    %1046 = vmatpush1.bf16.msra.mxu0 %v1023
    %1047 = vmatprep.subr.bf16.mxu0 0
    %1048 = vmatpush1.bf16.msra.mxu0 %v1024
    %1049 = vmatprep.subr.bf16.mxu0 0
    %1050 = vmatpush1.bf16.msra.mxu0 0
    %1051 = vmatprep.subr.bf16.mxu0 0
    %1052 = vmatpush1.bf16.msra.mxu0 0
    %1053 = vmatprep.subr.bf16.mxu0 0
    %1054 = vmatpush1.bf16.msra.mxu0 0
    %1055 = vmatprep.subr.bf16.mxu0 0
    %1056 = vmatpush1.bf16.msra.mxu0 0
    %1057 = vmatprep.subr.bf16.mxu0 0
    %1058 = vmatpush1.bf16.msra.mxu0 0
    %1059 = vmatprep.subr.bf16.mxu0 0
    %1060 = vmatpush1.bf16.msra.mxu0 0
    %1061 = vmatprep.subr.bf16.mxu0 0
    %1062 = vmatpush1.bf16.msra.mxu0 0
    %1063 = vmatprep.subr.bf16.mxu0 0
    %1064 = vmatpush1.bf16.msra.mxu0 0
    %1065 = vmatprep.subr.bf16.mxu0 0
    %1066 = vmatpush1.bf16.msra.mxu0 0
    %1067 = vmatprep.subr.bf16.mxu0 0
    %1068 = vmatpush1.bf16.msra.mxu0 0
    %1069 = vmatprep.subr.bf16.mxu0 0
    %1070 = vmatpush1.bf16.msra.mxu0 0
    %1071 = vmatprep.subr.bf16.mxu0 0
    %1072 = vmatpush1.bf16.msra.mxu0 0
    %1073 = vmatprep.subr.bf16.mxu0 0
    %1074 = vmatpush1.bf16.msra.mxu0 0
    %1075 = vmatprep.subr.bf16.mxu0 0
    %1076 = vmatpush1.bf16.msra.mxu0 0
    %1077 = vmatprep.mubr.bf16.mxu0 0
    %1078 = vmatmul.mubr.bf16.gmra.mrb[0].mxu0 %v1043
    %v1079 = vpop.f32.mrb[0].mxu0
    %v1080 = vadd.f32 %v1030, %v1079
    %v1081 = vpop.f32.mrb[0].mxu0
    %v1082 = vpop.f32.mrb[0].mxu0
    %v1083 = vpop.f32.mrb[0].mxu0
    %1084 = vdwg.mxu0
    %vm1085 = vcmask 25600
    %1086 = vst.msk [vmem:[#allocation2] sm:$0x3] %vm1085, %v1080
    // Predicated region
    $region34: #{tpu_custom_call.1} parent=1 // pred_check
      _
    $region35: #{tpu_custom_call.1} parent=1 // pred_check_branch
      %1088 = sbr.rel (0) target = $region37
    $region36: #{tpu_custom_call.1} parent=1 // pred_region
      %s1090 = ssub.s32 32, 32
      %1091 = vsyncadd [#allocation3], %s1090
      %s1093 = sshll.u32 [#allocation2], 4
      %s1094 = int_to_ptr.vmem [resolvable:$true] %s1093
      %1096 = dma.vmem_to_hbm [thread:$0]  %s1094, 32, %s8, [#allocation3]
    $region37: #{tpu_custom_call.1} parent=1 // pred_fallthru
      _
    // Predicated region
    $region38: #{tpu_custom_call.1} parent=1 // pred_check
      _
    $region39: #{tpu_custom_call.1} parent=1 // pred_check_branch
      %1098 = sbr.rel (0) target = $region41
    $region40: #{tpu_custom_call.1} parent=1 // pred_region
      %1099 = dma.done [#allocation3], 32
    $region41: #{tpu_custom_call.1} parent=1 // pred_fallthru
      _
    %1100 = vsyncpa [#allocation3], 1

</llo_original>
